<compile_context>
chip_gen: v5e
topology: v5e:2x2
jax: 0.10.0
libtpu: 0.0.40
codegen_flags: <defaults>
</compile_context>

<pallas_src>
import jax
import jax.numpy as jnp
from jax.experimental import pallas as pl
from jax.experimental.pallas import tpu as pltpu


def _round_up(x, m):
    return -(-x // m) * m


def enc_combiner_kernel(x1_ref, x2_ref, w_ref, b_ref, out_ref):
    # 1x1 conv over channels == (C_out, C_dec) @ (C_dec, ts) on the MXU,
    # fused with bias add + skip-add on the VPU.  Single lane-dense store.
    acc = jnp.dot(w_ref[...], x2_ref[...], preferred_element_type=jnp.float32)
    out_ref[...] = (acc + b_ref[...] + x1_ref[...]).astype(out_ref.dtype)


def _physical_vmem_bytes():
    """Per-core VMEM capacity; conservative fallback = v7x (64 MiB / TC)."""
    try:
        info = pltpu.get_tpu_info()
        for attr in ("vmem_capacity_bytes", "vmem_bytes", "vmem_size_bytes"):
            v = getattr(info, attr, None)
            if v:
                return int(v)
    except Exception:
        pass
    return 64 << 20


def enc_combiner(x1, x2, w, b, *, mxu_dtype=None):
    """NVAE EncCombinerCell forward: x1 + Conv2d(C_dec, C_out, 1, bias=True)(x2).

    x1: (N, C_out, H, W)   x2: (N, C_dec, H, W)   w: (C_out, C_dec)   b: (C_out,)
    Returns (N, C_out, H, W) in x1.dtype.
    """
    N, C_out, H, W = x1.shape
    N2, C_dec, H2, W2 = x2.shape
    assert (N, H, W) == (N2, H2, W2), "x1/x2 batch & spatial dims must match"
    assert w.shape == (C_out, C_dec) and b.shape == (C_out,)
    S = H * W
    out_dtype = x1.dtype
    item = lambda a: jnp.dtype(a.dtype).itemsize
    out_item = jnp.dtype(out_dtype).itemsize

    # Free, contiguous reshapes only (stay NCHW; fold spatial into lane axis).
    x1f = x1.reshape(N, C_out, S)
    x2f = x2.reshape(N, C_dec, S)
    b2 = b.reshape(C_out, 1).astype(jnp.float32)
    # One-time wrapper cast of the tiny weight to the activation dtype so the
    # MXU runs in the activations' dtype with f32 accumulation; no in-kernel cast.
    w_in = w.astype(mxu_dtype if mxu_dtype is not None else x2.dtype)

    # ---------------- VMEM budgeting (generation aware) ----------------------
    cap = int(_physical_vmem_bytes() * 0.70)   # ~45 MiB on v7x, ~90 MiB v5e/v6e
    tile_budget = int(cap * 0.75)              # headroom for compiler scratch

    c_out_p = _round_up(C_out, 8)
    c_dec_p = _round_up(C_dec, 8)
    # Constant blocks (single-buffered via pl.Buffered(1)): w + bias, padded.
    fixed = (c_out_p * _round_up(C_dec, 128) * item(w_in) + c_out_p * 128 * 4)
    # Per spatial column: double-buffered x1/x2/out tiles + f32 dot/add temp.
    per_col = (2 * (c_out_p * item(x1) + c_dec_p * item(x2) + c_out_p * out_item)
               + c_out_p * 4)
    max_cols = max(128, (tile_budget - fixed) // per_col)

    # ------------- spatial tile: as big as fits, >=2 parallel steps ----------
    # v7x has 2 TensorCores; make sure the parallel grid has at least 2 steps
    # (even counts balance best).  Irrelevant on v5e/v6e (single TC).
    need_split = (N < 2) and (S >= 256)
    if S <= max_cols and not need_split:
        ts = S                                  # full dim is always a legal block
    else:
        upper = min(max_cols, S)
        if need_split:
            upper = min(upper, -(-S // 2))      # force >= 2 spatial tiles
        upper = max(128, (upper // 128) * 128)  # multiple of 128 -> unmasked vst
        # Among multiples of 128 within 25% of the max, prefer the smallest
        # ragged tail (fewer masked partial stores / padded DMA columns).
        ts, best_pad = upper, (-S) % upper
        cand, lo = upper - 128, max(128, int(upper * 0.75))
        while cand >= lo and best_pad:
            pad = (-S) % cand
            if pad < best_pad:
                ts, best_pad = cand, pad
            cand -= 128
    n_s = pl.cdiv(S, ts)

    # Explicit VMEM limit: actual double-buffered working set + ~25% + 2 MiB,
    # floored at 16 MiB (safe everywhere), capped at ~70% of physical VMEM.
    ts_p = _round_up(ts, 128)
    working = (2 * ts_p * (c_out_p * item(x1) + c_dec_p * item(x2) + c_out_p * out_item)
               + ts_p * c_out_p * 4 + fixed)
    vmem_limit = int(min(cap, max(16 << 20, int(working * 1.25) + (2 << 20))))

    # ------------------------------- specs -----------------------------------
    x1_spec = pl.BlockSpec((pl.Squeezed(), C_out, ts), lambda n, s: (n, 0, s))
    x2_spec = pl.BlockSpec((pl.Squeezed(), C_dec, ts), lambda n, s: (n, 0, s))
    w_spec = pl.BlockSpec((C_out, C_dec), lambda n, s: (0, 0),
                          pipeline_mode=pl.Buffered(1))
    b_spec = pl.BlockSpec((C_out, 1), lambda n, s: (0, 0),
                          pipeline_mode=pl.Buffered(1))
    out_spec = pl.BlockSpec((pl.Squeezed(), C_out, ts), lambda n, s: (n, 0, s))

    cost = pl.CostEstimate(
        flops=2 * N * C_out * C_dec * S,
        transcendentals=0,
        bytes_accessed=int(x1f.size * item(x1) + x2f.size * item(x2)
                           + N * C_out * S * out_item
                           + w_in.size * item(w_in) + C_out * 4))

    out = pl.pallas_call(
        enc_combiner_kernel,
        out_shape=jax.ShapeDtypeStruct((N, C_out, S), out_dtype),
        grid=(N, n_s),
        in_specs=[x1_spec, x2_spec, w_spec, b_spec],
        out_specs=out_spec,
        compiler_params=pltpu.CompilerParams(
            dimension_semantics=("parallel", "parallel"),
            vmem_limit_bytes=vmem_limit),
        cost_estimate=cost,
    )(x1f, x2f, w_in, b2)

    return out.reshape(N, C_out, H, W)


def reference_nchw(x1, x2, w, b):
    """Pure-JAX reference mirroring the PyTorch module exactly (NCHW, full f32)."""
    conv = jnp.einsum('dc,nchw->ndhw', w, x2, precision=jax.lax.Precision.HIGHEST)
    return x1 + conv + b.reshape(1, -1, 1, 1)


if __name__ == "__main__":
    key = jax.random.PRNGKey(0)
    k1, k2, kw, kb = jax.random.split(key, 4)

    # EncCombinerCell(encoder_channels, decoder_channels, out_channels):
    # `encoder_channels` is unused in the PyTorch forward; x1 carries
    # out_channels (skip-add shape), x2 carries decoder_channels.
    N, C_dec, C_out, H, W = 2, 4, 8, 16, 16

    x1 = jax.random.normal(k1, (N, C_out, H, W), jnp.float32)   # encoder feature
    x2 = jax.random.normal(k2, (N, C_dec, H, W), jnp.float32)   # decoder feature

    # nn.Conv2d(C_dec, C_out, 1) default init: U(-1/sqrt(fan_in), 1/sqrt(fan_in)).
    scale = 1.0 / (C_dec ** 0.5)
    w = jax.random.uniform(kw, (C_out, C_dec), jnp.float32, -scale, scale)
    b = jax.random.uniform(kb, (C_out,), jnp.float32, -scale, scale)

    out = jax.block_until_ready(enc_combiner(x1, x2, w, b))

    ref = reference_nchw(x1, x2, w, b)
    assert out.shape == (N, C_out, H, W), out.shape
    err = float(jnp.max(jnp.abs(out - ref)))
    assert err < 1e-4, f"max abs err {err}"

    print("KERNEL_OK")
</pallas_src>

<mosaic_0001>
module attributes {stable_mosaic.version = 11 : i64} {
  func.func @enc_combiner_kernel(%arg0: i32, %arg1: i32, %arg2: memref<1x8x256xf32, #tpu.memory_space<vmem>>, %arg3: memref<1x4x256xf32, #tpu.memory_space<vmem>>, %arg4: memref<8x4xf32, #tpu.memory_space<vmem>>, %arg5: memref<8x1xf32, #tpu.memory_space<vmem>>, %arg6: memref<1x8x256xf32, #tpu.memory_space<vmem>>) attributes {dimension_semantics = [#tpu.dimension_semantics<parallel>, #tpu.dimension_semantics<parallel>], iteration_bounds = array<i64: 2, 1>, scalar_prefetch = 0 : i64, scratch_operands = 0 : i64, tpu.core_type = #tpu.core_type<tc>, window_params = [{transform_indices = @transform_0, window_bounds = array<i64: 1, 8, 256>}, {transform_indices = @transform_1, window_bounds = array<i64: 1, 4, 256>}, {pipeline_mode = #tpu.pipeline_mode<synchronous>, transform_indices = @transform_2, window_bounds = array<i64: 8, 4>}, {pipeline_mode = #tpu.pipeline_mode<synchronous>, transform_indices = @transform_3, window_bounds = array<i64: 8, 1>}, {transform_indices = @transform_4, window_bounds = array<i64: 1, 8, 256>}]} {
    %c0 = arith.constant 0 : index
    %c0_0 = arith.constant 0 : index
    %0 = vector.load %arg4[%c0, %c0_0] : memref<8x4xf32, #tpu.memory_space<vmem>>, vector<8x4xf32>
    %c0_1 = arith.constant 0 : index
    %c0_2 = arith.constant 0 : index
    %c0_3 = arith.constant 0 : index
    %1 = vector.load %arg3[%c0_1, %c0_2, %c0_3] : memref<1x4x256xf32, #tpu.memory_space<vmem>>, vector<1x4x256xf32>
    %2 = vector.shape_cast %1 : vector<1x4x256xf32> to vector<4x256xf32>
    %cst = arith.constant dense<0.000000e+00> : vector<8x256xf32>
    %3 = tpu.matmul %0, %2, %cst {dimension_numbers = #tpu.dot_dimension_numbers<[1], [0], [0], [1], [0, 0, 1, 1], [], []>} : vector<8x4xf32>, vector<4x256xf32>, vector<8x256xf32> -> vector<8x256xf32>
    %c0_4 = arith.constant 0 : index
    %c0_5 = arith.constant 0 : index
    %4 = vector.load %arg5[%c0_4, %c0_5] : memref<8x1xf32, #tpu.memory_space<vmem>>, vector<8x1xf32>
    %5 = vector.broadcast %4 : vector<8x1xf32> to vector<8x256xf32>
    %6 = arith.addf %3, %5 : vector<8x256xf32>
    %c0_6 = arith.constant 0 : index
    %c0_7 = arith.constant 0 : index
    %c0_8 = arith.constant 0 : index
    %7 = vector.load %arg2[%c0_6, %c0_7, %c0_8] : memref<1x8x256xf32, #tpu.memory_space<vmem>>, vector<1x8x256xf32>
    %8 = vector.shape_cast %7 : vector<1x8x256xf32> to vector<8x256xf32>
    %9 = arith.addf %6, %8 : vector<8x256xf32>
    %c0_9 = arith.constant 0 : index
    %c0_10 = arith.constant 0 : index
    %c0_11 = arith.constant 0 : index
    %10 = vector.load %arg6[%c0_9, %c0_10, %c0_11] : memref<1x8x256xf32, #tpu.memory_space<vmem>>, vector<1x8x256xf32>
    %11 = vector.shape_cast %10 : vector<1x8x256xf32> to vector<8x256xf32>
    %12 = vector.shape_cast %9 : vector<8x256xf32> to vector<1x8x256xf32>
    tpu.vector_store %arg6[%c0_9, %c0_10, %c0_11], %12 {strides = array<i32>} : memref<1x8x256xf32, #tpu.memory_space<vmem>>, vector<1x8x256xf32>,
    return
  }
  func.func @transform_0(%arg0: i32, %arg1: i32) -> (i32, i32, i32) {
    %c0_i32 = arith.constant 0 : i32
    %c0_i32_0 = arith.constant 0 : i32
    return %arg0, %c0_i32, %arg1 : i32, i32, i32
  }
  func.func @transform_1(%arg0: i32, %arg1: i32) -> (i32, i32, i32) {
    %c0_i32 = arith.constant 0 : i32
    %c0_i32_0 = arith.constant 0 : i32
    return %arg0, %c0_i32, %arg1 : i32, i32, i32
  }
  func.func @transform_2(%arg0: i32, %arg1: i32) -> (i32, i32) {
    %c0_i32 = arith.constant 0 : i32
    %c0_i32_0 = arith.constant 0 : i32
    %c0_i32_1 = arith.constant 0 : i32
    return %c0_i32, %c0_i32_0 : i32, i32
  }
  func.func @transform_3(%arg0: i32, %arg1: i32) -> (i32, i32) {
    %c0_i32 = arith.constant 0 : i32
    %c0_i32_0 = arith.constant 0 : i32
    %c0_i32_1 = arith.constant 0 : i32
    return %c0_i32, %c0_i32_0 : i32, i32
  }
  func.func @transform_4(%arg0: i32, %arg1: i32) -> (i32, i32, i32) {
    %c0_i32 = arith.constant 0 : i32
    %c0_i32_0 = arith.constant 0 : i32
    return %arg0, %c0_i32, %arg1 : i32, i32, i32
  }
}

</mosaic_0001>

<llo_original>
// kernel: tpu_custom_call.1
$region0: #{tpu_custom_call.1}
  #allocation0 [shape = 'u32[]', space=smem, size = 0x4, offset = 0x4, fixed_abs, tag = 'smem constant byte address 0x4 - core index']
  #allocation1 [shape = 'u32[72,128]{1,0:T(1,128)}', space=vmem, size = 0x9000, scoped, tag = 'internal scratch']
  %s0 = inlined_call_operand.hbm [shape: f32[2,8,256], index: 0, kind: input, shape index: {}]
  %s1 = inlined_call_operand.vmem [shape: f32[2,4,256], index: 1, kind: input, shape index: {}]
  %s2 = inlined_call_operand.vmem [shape: f32[8,4], index: 2, kind: input, shape index: {}]
  %s3 = inlined_call_operand.vmem [shape: f32[8,1], index: 3, kind: input, shape index: {}]
  %s4 = inlined_call_operand.hbm [shape: f32[2,8,256], index: 4, kind: output, shape index: {}]
  %s5 = sld [smem:[#allocation0]]
  $region53: #{tpu_custom_call.1} parent=0
    _
  %s7 = ssub.s32 1, %s5
  %s8 = scalar_select 0, %s7, %s5
  $region1: #{tpu_custom_call.1} parent=0
    #allocation2 [shape = 'u8[16384]{0}', space=vmem, size = 0x4000, scoped, tag = 'input window, operand 0']
    #allocation3 [shape = 's32[2]{0}', space=sflag, size = 0x8, scoped, tag = 'scoped memory for tpu_custom_call.1']
    #allocation4 [shape = 's32[2]{0}', space=sflag, size = 0x8, scoped, tag = 'scoped memory for tpu_custom_call.1']
    #allocation5 [shape = 'u8[16384]{0}', space=vmem, size = 0x4000, scoped, tag = 'output window, operand 0']
    %9 = vsyncpa [#allocation3], 0
    %s10 = scalar_lea.sflag [#allocation3], 1
    %11 = vsyncpa %s10, 0
    %12 = vsyncpa [#allocation4], 0
    %s13 = scalar_lea.sflag [#allocation4], 1
    %14 = vsyncpa %s13, 0
    loop: start=0, step=1, limit=4
    $region2: #{tpu_custom_call.1} parent=1 // loop_pre_header
      _
    $region3: #{tpu_custom_call.1} parent=1 // loop_header
      %s16 = sphi 0, %s20
      %p17 = scmp.ge.s32.totalorder %s16, 4
      %s23 = sphi 0, %s35
      %s24 = sphi 0, %s31
      %s25 = sphi 0, %s23
      %s26 = sphi 0, %s24
      %s27 = sphi 0, %s25
      %s28 = sphi 0, %s26
      %s40 = sphi 0, %s42
      %s43 = sphi 0, %s40
      %s44 = sphi 0, %s43
      %s60 = sphi 0, %s44
      %s68 = sphi 0, %s70
      %s71 = sphi 0, %s68
      %s72 = sphi 0, %s71
      %s88 = sphi 0, %s72
      %s92 = sphi 0, %s92
      %s94 = sphi 0, %s92
      %s95 = sphi 0, %s94
      %s109 = sphi 0, %s95
      %s113 = sphi 0, %s113
      %s115 = sphi 0, %s113
      %s116 = sphi 0, %s115
      %s130 = sphi 0, %s116
      %s138 = sphi 0, %s140
      %s141 = sphi 0, %s138
      %s142 = sphi 0, %s141
      %s158 = sphi 0, %s142
    $region4: #{tpu_custom_call.1} parent=1 // loop_header_branch
      %19 = sbr.rel (%p17) target = $region8
    $region5: #{tpu_custom_call.1} parent=1 // loop_body
      %s21 = ssub.s32 %s16, 1
      %s22 = ssub.s32 %s16, 2
      %s29 = sadd.s32 1, %s24
      %p30 = scmp.ge.s32.totalorder %s29, 1
      %s31 = scalar_select %p30, 0, %s29
      %s32 = sadd.s32 1, %s23
      %s33 = scalar_select %p30, %s32, %s23
      %p34 = scmp.ge.s32.totalorder %s33, 2
      %s35 = scalar_select %p34, 0, %s33
      %s36 = ssub.s32 %s23, %s35
      %s37 = ssub.s32 %s24, %s31
      %s38 = sor.u32 %s36, %s37
      %p39 = scmp.eq.s32.totalorder %s38, 0
      %s41 = sadd.s32 %s40, 1
      %s42 = scalar_select %p39, %s40, %s41
      %p45 = pneg %p39
      %p46 = scmp.eq.s32.totalorder %s16, 1
      %p47 = por %p45, %p46
      %p48 = scmp.ne.s32.totalorder %s40, %s43
      %p49 = scmp.eq.s32.totalorder %s16, 0
      %p50 = por %p48, %p49
      %p51 = scmp.ne.s32.totalorder %s40, %s43
      %p52 = scmp.eq.s32.totalorder %s21, 1
      %p53 = por %p51, %p52
      %p54 = scmp.ne.s32.totalorder %s43, %s44
      %p55 = scmp.eq.s32.totalorder %s21, 0
      %p56 = por %p54, %p55
      %p57 = scmp.ne.s32.totalorder %s43, %s44
      %p58 = scmp.eq.s32.totalorder %s22, 1
      %p59 = por %p57, %p58
      %p61 = scmp.ne.s32.totalorder %s44, %s60
      %p62 = scmp.eq.s32.totalorder %s22, 0
      %p63 = por %p61, %p62
      %s64 = ssub.s32 %s23, %s35
      %s65 = ssub.s32 %s24, %s31
      %s66 = sor.u32 %s64, %s65
      %p67 = scmp.eq.s32.totalorder %s66, 0
      %s69 = sadd.s32 %s68, 1
      %s70 = scalar_select %p67, %s68, %s69
      %p73 = pneg %p67
      %p74 = scmp.eq.s32.totalorder %s16, 1
      %p75 = por %p73, %p74
      %p76 = scmp.ne.s32.totalorder %s68, %s71
      %p77 = scmp.eq.s32.totalorder %s16, 0
      %p78 = por %p76, %p77
      %p79 = scmp.ne.s32.totalorder %s68, %s71
      %p80 = scmp.eq.s32.totalorder %s21, 1
      %p81 = por %p79, %p80
      %p82 = scmp.ne.s32.totalorder %s71, %s72
      %p83 = scmp.eq.s32.totalorder %s21, 0
      %p84 = por %p82, %p83
      %p85 = scmp.ne.s32.totalorder %s71, %s72
      %p86 = scmp.eq.s32.totalorder %s22, 1
      %p87 = por %p85, %p86
      %p89 = scmp.ne.s32.totalorder %s72, %s88
      %p90 = scmp.eq.s32.totalorder %s22, 0
      %p91 = por %p89, %p90
      %s93 = sadd.s32 %s92, 1
      %p96 = scmp.eq.s32.totalorder %s16, 1
      %p97 = scmp.ne.s32.totalorder %s92, %s94
      %p98 = scmp.eq.s32.totalorder %s16, 0
      %p99 = por %p97, %p98
      %p100 = scmp.ne.s32.totalorder %s92, %s94
      %p101 = scmp.eq.s32.totalorder %s21, 1
      %p102 = por %p100, %p101
      %p103 = scmp.ne.s32.totalorder %s94, %s95
      %p104 = scmp.eq.s32.totalorder %s21, 0
      %p105 = por %p103, %p104
      %p106 = scmp.ne.s32.totalorder %s94, %s95
      %p107 = scmp.eq.s32.totalorder %s22, 1
      %p108 = por %p106, %p107
      %p110 = scmp.ne.s32.totalorder %s95, %s109
      %p111 = scmp.eq.s32.totalorder %s22, 0
      %p112 = por %p110, %p111
      %s114 = sadd.s32 %s113, 1
      %p117 = scmp.eq.s32.totalorder %s16, 1
      %p118 = scmp.ne.s32.totalorder %s113, %s115
      %p119 = scmp.eq.s32.totalorder %s16, 0
      %p120 = por %p118, %p119
      %p121 = scmp.ne.s32.totalorder %s113, %s115
      %p122 = scmp.eq.s32.totalorder %s21, 1
      %p123 = por %p121, %p122
      %p124 = scmp.ne.s32.totalorder %s115, %s116
      %p125 = scmp.eq.s32.totalorder %s21, 0
      %p126 = por %p124, %p125
      %p127 = scmp.ne.s32.totalorder %s115, %s116
      %p128 = scmp.eq.s32.totalorder %s22, 1
      %p129 = por %p127, %p128
      %p131 = scmp.ne.s32.totalorder %s116, %s130
      %p132 = scmp.eq.s32.totalorder %s22, 0
      %p133 = por %p131, %p132
      %s134 = ssub.s32 %s23, %s35
      %s135 = ssub.s32 %s24, %s31
      %s136 = sor.u32 %s134, %s135
      %p137 = scmp.eq.s32.totalorder %s136, 0
      %s139 = sadd.s32 %s138, 1
      %s140 = scalar_select %p137, %s138, %s139
      %p143 = pneg %p137
      %p144 = scmp.eq.s32.totalorder %s16, 1
      %p145 = por %p143, %p144
      %p146 = scmp.ne.s32.totalorder %s138, %s141
      %p147 = scmp.eq.s32.totalorder %s16, 0
      %p148 = por %p146, %p147
      %p149 = scmp.ne.s32.totalorder %s138, %s141
      %p150 = scmp.eq.s32.totalorder %s21, 1
      %p151 = por %p149, %p150
      %p152 = scmp.ne.s32.totalorder %s141, %s142
      %p153 = scmp.eq.s32.totalorder %s21, 0
      %p154 = por %p152, %p153
      %p155 = scmp.ne.s32.totalorder %s141, %s142
      %p156 = scmp.eq.s32.totalorder %s22, 1
      %p157 = por %p155, %p156
      %p159 = scmp.ne.s32.totalorder %s142, %s158
      %p160 = scmp.eq.s32.totalorder %s22, 0
      %p161 = por %p159, %p160
      %p162 = scmp.le.s32.totalorder 1, %s16
      %p163 = scmp.lt.s32.totalorder %s16, 3
      %p164 = pnand %p162, %p163
      %p165 = pneg %p164
      // Predicated region
      $region9: #{tpu_custom_call.1} parent=5 // pred_check
        _
      $region10: #{tpu_custom_call.1} parent=5 // pred_check_branch
        %167 = sbr.rel (%p164) target = $region12
      $region11: #{tpu_custom_call.1} parent=5 // pred_region
        %s168 = ssub.s32 %s16, 1
        // Predicated region
        $region13: #{tpu_custom_call.1} parent=11 // pred_check
          %p169 = pneg %p105
        $region14: #{tpu_custom_call.1} parent=11 // pred_check_branch
          %171 = sbr.rel (%p169) target = $region16
        $region15: #{tpu_custom_call.1} parent=11 // pred_region
          _
        $region16: #{tpu_custom_call.1} parent=11 // pred_fallthru
          _
        // Predicated region
        $region17: #{tpu_custom_call.1} parent=11 // pred_check
          %p172 = pneg %p126
        $region18: #{tpu_custom_call.1} parent=11 // pred_check_branch
          %174 = sbr.rel (%p172) target = $region20
        $region19: #{tpu_custom_call.1} parent=11 // pred_region
          _
        $region20: #{tpu_custom_call.1} parent=11 // pred_fallthru
          _
      $region12: #{tpu_custom_call.1} parent=5 // pred_fallthru
        _
      %p175 = scmp.lt.s32.totalorder %s16, 2
      // Predicated region
      $region21: #{tpu_custom_call.1} parent=5 // pred_check
        %p176 = pneg %p175
      $region22: #{tpu_custom_call.1} parent=5 // pred_check_branch
        %178 = sbr.rel (%p176) target = $region24
      $region23: #{tpu_custom_call.1} parent=5 // pred_region
        // Predicated region
        $region25: #{tpu_custom_call.1} parent=23 // pred_check
          %p179 = pneg %p50
        $region26: #{tpu_custom_call.1} parent=23 // pred_check_branch
          %181 = sbr.rel (%p179) target = $region28
        $region27: #{tpu_custom_call.1} parent=23 // pred_region
          %s182 = sand.u32 %s40, 1
          %s183 = scalar_lea.sflag [#allocation3], %s182
          %s184 = sand.u32 %s40, 1
          %s185 = smul.addr %s184, 16
          %s186 = scalar_lea.vmem [#allocation2], %s185
          %s187 = smul.u32 2, %s24
          %189 = vsyncadd %s183, 0
          %s190 = smul.addr %s23, 2
          %s191 = sadd.s32 %s187, %s190
          %s192 = smul.addr %s191, 8
          %s193 = scalar_lea.hbm %s0, %s192
          %s195 = sshll.u32 %s193, 4
          %s196 = int_to_ptr.hbm [resolvable:$true] %s195
          %s197 = sshll.u32 %s186, 4
          %s198 = int_to_ptr.vmem [resolvable:$true] %s197
          %200 = dma.hbm_to_vmem [thread:$0]  %s196, 256, %s198, %s183
        $region28: #{tpu_custom_call.1} parent=23 // pred_fallthru
          _
        // Predicated region
        $region29: #{tpu_custom_call.1} parent=23 // pred_check
          %p201 = pneg %p78
        $region30: #{tpu_custom_call.1} parent=23 // pred_check_branch
          %203 = sbr.rel (%p201) target = $region32
        $region31: #{tpu_custom_call.1} parent=23 // pred_region
          %s204 = smul.u32 2, %s24
          %p205 = scmp.lt.s32.totalorder %s23, 1
          %s206 = scalar_select %p205, %s23, 1
          %p207 = scmp.lt.s32.totalorder %s204, 1
          %s208 = scalar_select %p207, %s204, 1
          %s209 = smul.addr %s206, 2
          %s210 = sadd.s32 %s208, %s209
          %s211 = smul.addr %s210, 4
          %s212 = scalar_lea.vmem %s1, %s211
          %s213 = smul.u32 2, %s24
        $region32: #{tpu_custom_call.1} parent=23 // pred_fallthru
          _
      $region24: #{tpu_custom_call.1} parent=5 // pred_fallthru
        _
      %p214 = scmp.le.s32.totalorder 1, %s16
      %p215 = scmp.lt.s32.totalorder %s16, 3
      %p216 = pnand %p214, %p215
      %p217 = pneg %p216
      // Predicated region
      $region33: #{tpu_custom_call.1} parent=5 // pred_check
        _
      $region34: #{tpu_custom_call.1} parent=5 // pred_check_branch
        %219 = sbr.rel (%p216) target = $region36
      $region35: #{tpu_custom_call.1} parent=5 // pred_region
        %s220 = ssub.s32 %s16, 1
        %s221 = sand.u32 %s43, 1
        %s222 = scalar_lea.sflag [#allocation3], %s221
        %s223 = sand.u32 %s43, 1
        %s224 = smul.addr %s223, 16
        %s225 = scalar_lea.vmem [#allocation2], %s224
        // Predicated region
        $region37: #{tpu_custom_call.1} parent=35 // pred_check
          %p226 = pneg %p56
        $region38: #{tpu_custom_call.1} parent=35 // pred_check_branch
          %228 = sbr.rel (%p226) target = $region40
        $region39: #{tpu_custom_call.1} parent=35 // pred_region
          %230 = dma.done %s222, 256
        $region40: #{tpu_custom_call.1} parent=35 // pred_fallthru
          _
        %s231 = sand.u32 %s43, 1
        %s232 = scalar_lea.sflag [#allocation3], %s231
        %s233 = sand.u32 %s43, 1
        %s234 = smul.addr %s233, 16
        %s235 = scalar_lea.vmem [#allocation2], %s234
        %p236 = pneg %p56
        %p237 = pneg %p53
        %s238 = smul.u32 2, %s26
        %p239 = scmp.lt.s32.totalorder %s25, 1
        %s240 = scalar_select %p239, %s25, 1
        %p241 = scmp.lt.s32.totalorder %s238, 1
        %s242 = scalar_select %p241, %s238, 1
        %s243 = smul.addr %s240, 2
        %s244 = sadd.s32 %s242, %s243
        %s245 = smul.addr %s244, 4
        %s246 = scalar_lea.vmem %s1, %s245
        %p247 = pneg %p84
        %p248 = pneg %p81
        %p249 = pneg %p105
        %p250 = pneg %p102
        %p251 = pneg %p126
        %p252 = pneg %p123
        %p253 = pneg %p154
        %p254 = pneg %p151
        %s255 = sand.u32 %s141, 1
        %s256 = scalar_lea.sflag [#allocation4], %s255
        %s257 = sand.u32 %s141, 1
        %s258 = smul.addr %s257, 16
        %s259 = scalar_lea.vmem [#allocation5], %s258
        %s260 = smul.u32 2, %s26
        %s261 = smul.u32 2, %s26
        %p262 = scmp.lt.s32.totalorder %s25, 1
        %s263 = scalar_select %p262, %s25, 1
        %p264 = scmp.lt.s32.totalorder %s261, 1
        %s265 = scalar_select %p264, %s261, 1
        %s266 = smul.addr %s263, 2
        %s267 = sadd.s32 %s265, %s266
        %s268 = smul.addr %s267, 4
        %s269 = scalar_lea.vmem %s1, %s268
        %s270 = smul.u32 2, %s26
        %s271 = smul.u32 2, %s26
        %v272 = vld [vmem:[%s2] sm:$0xff]
        %v273 = vld [vmem:[%s269] sm:$0xff]
        %v274 = vld [vmem:[%s3] sm:$0xff]
        %276 = vset.pattern.permute.xlu0 0
        %277 = vperm.xlu0 %276, %v274
        %v278 = vpop.permute.xlu0 %277
        %281 = vst [vmem:[#allocation1] ss:$2 sm:$0xff] %v273
        %v282 = vld.sshfl [vmem:[#allocation1] sm:$0xff pattern:$0x75316420]
        %v283 = vld.sshfl [vmem:[#allocation1 + $0x8] sm:$0xff pattern:$0x75316420]
        %vm284 = vcmask 31744
        %v286 = vsel %vm284, %v272, 0
        %vm288 = vcmask 1043456
        %v289 = vsel %vm288, %v282, 0
        %v291 = vsel %vm288, %v283, 0
        %293 = vmatpush.msra.mxu0 0.0
        %294 = vmatpush.msra.mxu0 0.0
        %295 = vmatpush.msra.mxu0 0.0
        %296 = vmatpush.msra.mxu0 0.0
        %297 = vmatpush.msra.mxu0 0.0
        %298 = vmatpush.msra.mxu0 0.0
        %299 = vmatpush.msra.mxu0 0.0
        %300 = vmatpush.msra.mxu0 0.0
        %301 = vmatpush.msra.mxu0 0.0
        %302 = vmatpush.msra.mxu0 0.0
        %303 = vmatpush.msra.mxu0 0.0
        %304 = vmatpush.msra.mxu0 0.0
        %305 = vmatpush.msra.mxu0 0.0
        %306 = vmatpush.msra.mxu0 0.0
        %307 = vmatpush.msra.mxu0 0.0
        %308 = vmatpush.msra.mxu0 %v289
        %309 = vmatmul.f32.gmra.mxu0 %v286
        %v310 = vpop.f32.mrf.mxu0
        %v311 = vadd.f32 %v278, %v310
        %312 = vdwg.mxu0
        %313 = vmatpush.msra.mxu0 0.0
        %314 = vmatpush.msra.mxu0 0.0
        %315 = vmatpush.msra.mxu0 0.0
        %316 = vmatpush.msra.mxu0 0.0
        %317 = vmatpush.msra.mxu0 0.0
        %318 = vmatpush.msra.mxu0 0.0
        %319 = vmatpush.msra.mxu0 0.0
        %320 = vmatpush.msra.mxu0 0.0
        %321 = vmatpush.msra.mxu0 0.0
        %322 = vmatpush.msra.mxu0 0.0
        %323 = vmatpush.msra.mxu0 0.0
        %324 = vmatpush.msra.mxu0 0.0
        %325 = vmatpush.msra.mxu0 0.0
        %326 = vmatpush.msra.mxu0 0.0
        %327 = vmatpush.msra.mxu0 0.0
        %328 = vmatpush.msra.mxu0 %v291
        %329 = vmatmul.f32.gmra.mxu0 %v286
        %v330 = vpop.f32.mrf.mxu0
        %v331 = vadd.f32 %v278, %v330
        %332 = vdwg.mxu0
        %v333 = vld [vmem:[%s225] sm:$0xff]
        %v334 = vld [vmem:[%s225 + $0x8] sm:$0xff]
        %v335 = vadd.f32 %v311, %v333
        %v336 = vadd.f32 %v331, %v334
        %337 = vst [vmem:[%s259] sm:$0xff] %v335
        %338 = vst [vmem:[%s259 + $0x8] sm:$0xff] %v336
        %s339 = sand.u32 %s141, 1
        %s340 = scalar_lea.sflag [#allocation4], %s339
        %s341 = sand.u32 %s141, 1
        %s342 = smul.addr %s341, 16
        %s343 = scalar_lea.vmem [#allocation5], %s342
        // Predicated region
        $region41: #{tpu_custom_call.1} parent=35 // pred_check
          %p344 = pneg %p151
        $region42: #{tpu_custom_call.1} parent=35 // pred_check_branch
          %346 = sbr.rel (%p344) target = $region44
        $region43: #{tpu_custom_call.1} parent=35 // pred_region
          %s347 = smul.u32 2, %s26
          %349 = vsyncadd %s340, 0
          %s350 = smul.addr %s25, 2
          %s351 = sadd.s32 %s347, %s350
          %s352 = smul.addr %s351, 8
          %s353 = scalar_lea.hbm %s4, %s352
          %s355 = sshll.u32 %s343, 4
          %s356 = int_to_ptr.vmem [resolvable:$true] %s355
          %s357 = sshll.u32 %s353, 4
          %s358 = int_to_ptr.hbm [resolvable:$true] %s357
          %360 = dma.vmem_to_hbm [thread:$0]  %s356, 256, %s358, %s340
        $region44: #{tpu_custom_call.1} parent=35 // pred_fallthru
          _
      $region36: #{tpu_custom_call.1} parent=5 // pred_fallthru
        _
      %p361 = scmp.le.s32.totalorder 2, %s16
      // Predicated region
      $region45: #{tpu_custom_call.1} parent=5 // pred_check
        %p362 = pneg %p361
      $region46: #{tpu_custom_call.1} parent=5 // pred_check_branch
        %364 = sbr.rel (%p362) target = $region48
      $region47: #{tpu_custom_call.1} parent=5 // pred_region
        %s365 = ssub.s32 %s16, 2
        // Predicated region
        $region49: #{tpu_custom_call.1} parent=47 // pred_check
          %p366 = pneg %p157
        $region50: #{tpu_custom_call.1} parent=47 // pred_check_branch
          %368 = sbr.rel (%p366) target = $region52
        $region51: #{tpu_custom_call.1} parent=47 // pred_region
          %s369 = sand.u32 %s142, 1
          %s370 = scalar_lea.sflag [#allocation4], %s369
          %s371 = sand.u32 %s142, 1
          %s372 = smul.addr %s371, 16
          %s373 = scalar_lea.vmem [#allocation5], %s372
          %375 = dma.done %s370, 256
        $region52: #{tpu_custom_call.1} parent=47 // pred_fallthru
          _
      $region48: #{tpu_custom_call.1} parent=5 // pred_fallthru
        _
    $region6: #{tpu_custom_call.1} parent=1 // loop_footer
      %s20 = sadd.s32 1, %s16
    $region7: #{tpu_custom_call.1} parent=1 // loop_footer_branch
      %15 = sbr.rel target = $region3
    $region8: #{tpu_custom_call.1} parent=1 // loop_exit
      _
    %376 = vsyncpa [#allocation3], 1
    %s377 = scalar_lea.sflag [#allocation3], 1
    %378 = vsyncpa %s377, 1
    %379 = vsyncpa [#allocation4], 1
    %s380 = scalar_lea.sflag [#allocation4], 1
    %381 = vsyncpa %s380, 1

</llo_original>
